<compile_context>
chip_gen: v7x
topology: tpu7x:2x2x1
jax: 0.10.0
libtpu: 0.0.40
codegen_flags: <defaults>
</compile_context>

<pallas_src>
import jax
import jax.numpy as jnp
from jax.experimental import pallas as pl
from jax.experimental.pallas import tpu as pltpu

LANE = 128
SUBLANE = 8


def _round_up(x: int, m: int) -> int:
    return (x + m - 1) // m * m


def _vmem_capacity_bytes() -> int:
    try:
        return int(pltpu.get_tpu_info().vmem_capacity_bytes)
    except Exception:
        return 64 * 1024 * 1024  # conservative fallback (v7x per-TC)


def _log_softmax_rows(logits):
    # Numerically stable log_softmax along the (lane) label axis, all f32.
    m = jnp.max(logits, axis=-1, keepdims=True)
    z = logits - m
    lse = jnp.log(jnp.sum(jnp.exp(z), axis=-1, keepdims=True))
    return z - lse


def _bow_resident_kernel(x_ref, wt_ref, b_ref, o_ref):
    """Grid = (batch tiles,). W^T/bias have constant block index -> loaded once."""
    x = x_ref[...].astype(wt_ref.dtype)            # in-kernel cast (f32 -> bf16)
    logits = jnp.dot(x, wt_ref[...], preferred_element_type=jnp.float32) + b_ref[...]
    o_ref[...] = _log_softmax_rows(logits)


def _bow_stream_kernel(x_ref, wt_ref, b_ref, o_ref):
    """Grid = (batch tiles, vocab tiles); vocab is the reduction (last, 'arbitrary').

    The output block index is k-invariant, so o_ref stays VMEM-resident across the
    reduction and doubles as the f32 accumulator (no scratch needed).
    """
    k = pl.program_id(1)
    part = jnp.dot(x_ref[...].astype(wt_ref.dtype), wt_ref[...],
                   preferred_element_type=jnp.float32)

    @pl.when(k == 0)
    def _init():
        o_ref[...] = part

    @pl.when(k > 0)
    def _accum():
        o_ref[...] += part

    @pl.when(k == pl.num_programs(1) - 1)
    def _finalize():
        o_ref[...] = _log_softmax_rows(o_ref[...] + b_ref[...])


def prepare_bow_params(weight, bias, *, stream_dtype=jnp.bfloat16,
                       max_tk=4096, resident_cap_bytes=6 * 1024 * 1024):
    """One-time parameter prep (hoisted out of the per-call path).

    weight: (L, V) PyTorch-Linear layout, bias: (L,).
    Builds the transposed, lane-padded (and bf16-cast) weight, a bias row with the
    padded-label mask baked in, and decides resident vs. vocab-streaming mode.
    """
    L, V = weight.shape
    Lp = _round_up(max(L, LANE), LANE)                    # lane-dense label dim
    wt_bytes = V * Lp * jnp.dtype(stream_dtype).itemsize
    resident = wt_bytes <= resident_cap_bytes

    if resident:
        tk, Vp = V, V                                      # whole vocab = one block
        wt = jnp.zeros((V, Lp), stream_dtype).at[:, :L].set(weight.T.astype(stream_dtype))
    else:
        nk = pl.cdiv(V, max_tk)
        tk = _round_up(pl.cdiv(V, nk), LANE)               # balanced tiles, minimal pad
        Vp = nk * tk
        wt = jnp.zeros((Vp, Lp), stream_dtype).at[:V, :L].set(weight.T.astype(stream_dtype))

    # Padded W^T columns are exactly zero, so masking the padded label lanes reduces
    # to a bias of -1e30 there (removes iota/where from the kernel's finalize path).
    b2 = jnp.full((1, Lp), -1e30, jnp.float32).at[0, :L].set(bias.astype(jnp.float32))

    return dict(wt=wt, b=b2, L=L, V=V, Lp=Lp, Vp=Vp, tk=tk, resident=resident,
                stream_dtype=stream_dtype)


def bow_classifier_forward(bow_vec, params, *, max_tm=512):
    """bow_vec: (B, V) in its native dtype. Returns log_softmax(x @ W.T + b, axis=1) (B, L) f32."""
    L, V, Lp, Vp, tk = (params[n] for n in ("L", "V", "Lp", "Vp", "tk"))
    wt, b2 = params["wt"], params["b"]
    resident = params["resident"]

    B, Vin = bow_vec.shape
    assert Vin == V, f"vocab mismatch: {Vin} vs {V}"

    vmem_cap = _vmem_capacity_bytes()
    budget = min(vmem_cap // 2, 40 * 1024 * 1024)         # working-set target, every gen

    # --- batch tile ------------------------------------------------------
    if B <= SUBLANE:
        tm = B                                             # block == full batch dim
    else:
        tm = min(max_tm, _round_up(B, SUBLANE))
        if resident and B >= 2 * SUBLANE:
            # W^T is resident, so extra batch tiles cost no additional HBM traffic:
            # keep >= 2 "parallel" tiles so v7x's second TensorCore is not idle.
            tm = min(tm, _round_up(pl.cdiv(B, 2), SUBLANE))

    xb = jnp.dtype(bow_vec.dtype).itemsize
    wb = jnp.dtype(wt.dtype).itemsize
    kv = Vp if resident else tk                            # contraction extent / grid step
    est_fn = lambda t: 2 * t * kv * xb + 2 * kv * Lp * wb + 2 * t * Lp * 4 + 8192
    while tm > SUBLANE and est_fn(tm) > budget:
        tm = max(SUBLANE, ((tm // 2) // SUBLANE) * SUBLANE)
    est = est_fn(tm)

    # Always request scoped VMEM: >= any generation's default (v5e: 16 MiB), but well
    # below physical per-core capacity (v7x: 64 MiB/TC).
    vmem_limit = int(min(max(est * 3 // 2, 32 * 1024 * 1024),
                         vmem_cap * 7 // 8, 112 * 1024 * 1024))

    # Pad x only when the shapes are not tile-aligned (rare). The common aligned case
    # (including the demo) streams bow_vec straight from HBM with zero wrapper copies;
    # the dtype cast happens in-kernel.
    Bp = _round_up(B, tm)
    x = bow_vec
    if (Bp, Vp) != (B, V):
        x = jnp.zeros((Bp, Vp), bow_vec.dtype).at[:B, :V].set(bow_vec)

    nb = Bp // tm
    if resident:
        grid = (nb,)
        in_specs = [
            pl.BlockSpec((tm, Vp), lambda i: (i, 0)),      # x tile, streamed per batch tile
            pl.BlockSpec((Vp, Lp), lambda i: (0, 0)),      # W^T: constant index -> loaded once
            pl.BlockSpec((1, Lp), lambda i: (0, 0)),       # bias (+ pad mask), resident
        ]
        out_specs = pl.BlockSpec((tm, Lp), lambda i: (i, 0))
        kernel = _bow_resident_kernel
        dims = ("parallel",)
    else:
        grid = (nb, Vp // tk)                              # batch (parallel), vocab (reduction)
        in_specs = [
            pl.BlockSpec((tm, tk), lambda i, k: (i, k)),   # x tile
            pl.BlockSpec((tk, Lp), lambda i, k: (k, 0)),   # W^T tile
            pl.BlockSpec((1, Lp), lambda i, k: (0, 0)),    # bias, resident
        ]
        out_specs = pl.BlockSpec((tm, Lp), lambda i, k: (i, 0))
        kernel = _bow_stream_kernel
        dims = ("parallel", "arbitrary")

    out = pl.pallas_call(
        kernel,
        out_shape=jax.ShapeDtypeStruct((Bp, Lp), jnp.float32),
        grid=grid,
        in_specs=in_specs,
        out_specs=out_specs,
        compiler_params=pltpu.CompilerParams(
            dimension_semantics=dims,
            vmem_limit_bytes=vmem_limit,
        ),
    )(x, wt, b2)

    return out[:B, :L]


def reference_forward(bow_vec, weight, bias, stream_dtype=jnp.bfloat16):
    # Same numerics as the kernel: bf16 operand streaming, f32 MXU accumulation,
    # f32 softmax math.
    x = bow_vec.astype(stream_dtype)
    w = weight.astype(stream_dtype)
    logits = jnp.dot(x, w.T, preferred_element_type=jnp.float32) + bias.astype(jnp.float32)
    return jax.nn.log_softmax(logits, axis=1)


if __name__ == "__main__":
    # Small shapes consistent with the module: batch=8, vocab_size=256, num_labels=4.
    BATCH, VOCAB_SIZE, NUM_LABELS = 8, 256, 4

    key = jax.random.PRNGKey(0)
    k_x, k_w, k_b = jax.random.split(key, 3)

    # nn.Linear-style uniform(-1/sqrt(V), 1/sqrt(V)) init.
    bound = 1.0 / (VOCAB_SIZE ** 0.5)
    weight = jax.random.uniform(k_w, (NUM_LABELS, VOCAB_SIZE), jnp.float32,
                                minval=-bound, maxval=bound)
    bias = jax.random.uniform(k_b, (NUM_LABELS,), jnp.float32,
                              minval=-bound, maxval=bound)

    # Synthetic bag-of-words counts (small non-negative integers -> exact in bf16).
    bow_vec = jax.random.randint(k_x, (BATCH, VOCAB_SIZE), 0, 3).astype(jnp.float32)

    # One-time parameter prep (transpose/pad/cast hoisted out of the forward path).
    params = prepare_bow_params(weight, bias)
    assert params["resident"]  # demo-sized vocab takes the single-dot resident path

    out = jax.block_until_ready(bow_classifier_forward(bow_vec, params))
    ref = reference_forward(bow_vec, weight, bias)
    assert out.shape == (BATCH, NUM_LABELS)
    assert bool(jnp.all(jnp.isfinite(out))), "non-finite values in output"
    assert jnp.allclose(out, ref, atol=2e-5, rtol=2e-5), "mismatch vs reference (resident)"

    # Also exercise the vocab-streaming fallback path with awkward (unaligned) shapes.
    B2, V2, L2 = 10, 200, 5
    k_x2, k_w2, k_b2 = jax.random.split(jax.random.PRNGKey(1), 3)
    bound2 = 1.0 / (V2 ** 0.5)
    w2 = jax.random.uniform(k_w2, (L2, V2), jnp.float32, minval=-bound2, maxval=bound2)
    bias2 = jax.random.uniform(k_b2, (L2,), jnp.float32, minval=-bound2, maxval=bound2)
    x2 = jax.random.randint(k_x2, (B2, V2), 0, 3).astype(jnp.float32)

    params2 = prepare_bow_params(w2, bias2, resident_cap_bytes=0, max_tk=128)
    assert not params2["resident"]
    out2 = jax.block_until_ready(bow_classifier_forward(x2, params2))
    ref2 = reference_forward(x2, w2, bias2)
    assert out2.shape == (B2, L2)
    assert bool(jnp.all(jnp.isfinite(out2))), "non-finite values in output (stream)"
    assert jnp.allclose(out2, ref2, atol=2e-5, rtol=2e-5), "mismatch vs reference (stream)"

    print("KERNEL_OK")
</pallas_src>

<mosaic_0001>
module attributes {stable_mosaic.version = 11 : i64} {
  func.func @_bow_resident_kernel(%arg0: i32, %arg1: memref<8x256xf32, #tpu.memory_space<vmem>>, %arg2: memref<256x128xbf16, #tpu.memory_space<vmem>>, %arg3: memref<1x128xf32, #tpu.memory_space<vmem>>, %arg4: memref<8x128xf32, #tpu.memory_space<vmem>>) attributes {dimension_semantics = [#tpu.dimension_semantics<parallel>], iteration_bounds = array<i64: 1>, scalar_prefetch = 0 : i64, scratch_operands = 0 : i64, tpu.core_type = #tpu.core_type<tc>, window_params = [{transform_indices = @transform_0, window_bounds = array<i64: 8, 256>}, {pipeline_mode = #tpu.pipeline_mode<synchronous>, transform_indices = @transform_1, window_bounds = array<i64: 256, 128>}, {pipeline_mode = #tpu.pipeline_mode<synchronous>, transform_indices = @transform_2, window_bounds = array<i64: 1, 128>}, {transform_indices = @transform_3, window_bounds = array<i64: 8, 128>}]} {
    %c0 = arith.constant 0 : index
    %c0_0 = arith.constant 0 : index
    %0 = vector.load %arg1[%c0, %c0_0] : memref<8x256xf32, #tpu.memory_space<vmem>>, vector<8x256xf32>
    %1 = arith.truncf %0 : vector<8x256xf32> to vector<8x256xbf16>
    %c0_1 = arith.constant 0 : index
    %c0_2 = arith.constant 0 : index
    %2 = vector.load %arg2[%c0_1, %c0_2] : memref<256x128xbf16, #tpu.memory_space<vmem>>, vector<256x128xbf16>
    %cst = arith.constant dense<0.000000e+00> : vector<8x128xf32>
    %3 = tpu.matmul %1, %2, %cst {dimension_numbers = #tpu.dot_dimension_numbers<[1], [0], [0], [1], [0, 0, 1, 1], [], []>} : vector<8x256xbf16>, vector<256x128xbf16>, vector<8x128xf32> -> vector<8x128xf32>
    %c0_3 = arith.constant 0 : index
    %c0_4 = arith.constant 0 : index
    %4 = vector.load %arg3[%c0_3, %c0_4] : memref<1x128xf32, #tpu.memory_space<vmem>>, vector<1x128xf32>
    %5 = vector.broadcast %4 : vector<1x128xf32> to vector<8x128xf32>
    %6 = arith.addf %3, %5 : vector<8x128xf32>
    %cst_5 = arith.constant dense<0xFF800000> : vector<8xf32>
    %7 = vector.multi_reduction <maximumf>, %6, %cst_5 [1] : vector<8x128xf32> to vector<8xf32>
    %8 = vector.shape_cast %7 : vector<8xf32> to vector<8x1xf32>
    %9 = vector.broadcast %8 : vector<8x1xf32> to vector<8x128xf32>
    %10 = arith.subf %6, %9 : vector<8x128xf32>
    %11 = math.exp %10 : vector<8x128xf32>
    %cst_6 = arith.constant dense<0.000000e+00> : vector<8xf32>
    %12 = vector.multi_reduction <add>, %11, %cst_6 [1] : vector<8x128xf32> to vector<8xf32>
    %13 = vector.shape_cast %12 : vector<8xf32> to vector<8x1xf32>
    %14 = math.log %13 : vector<8x1xf32>
    %15 = vector.broadcast %14 : vector<8x1xf32> to vector<8x128xf32>
    %16 = arith.subf %10, %15 : vector<8x128xf32>
    %c0_7 = arith.constant 0 : index
    %c0_8 = arith.constant 0 : index
    %17 = vector.load %arg4[%c0_7, %c0_8] : memref<8x128xf32, #tpu.memory_space<vmem>>, vector<8x128xf32>
    tpu.vector_store %arg4[%c0_7, %c0_8], %16 {strides = array<i32>} : memref<8x128xf32, #tpu.memory_space<vmem>>, vector<8x128xf32>,
    return
  }
  func.func @transform_0(%arg0: i32) -> (i32, i32) {
    %c0_i32 = arith.constant 0 : i32
    %c0_i32_0 = arith.constant 0 : i32
    return %arg0, %c0_i32 : i32, i32
  }
  func.func @transform_1(%arg0: i32) -> (i32, i32) {
    %c0_i32 = arith.constant 0 : i32
    %c0_i32_0 = arith.constant 0 : i32
    %c0_i32_1 = arith.constant 0 : i32
    return %c0_i32, %c0_i32_0 : i32, i32
  }
  func.func @transform_2(%arg0: i32) -> (i32, i32) {
    %c0_i32 = arith.constant 0 : i32
    %c0_i32_0 = arith.constant 0 : i32
    %c0_i32_1 = arith.constant 0 : i32
    return %c0_i32, %c0_i32_0 : i32, i32
  }
  func.func @transform_3(%arg0: i32) -> (i32, i32) {
    %c0_i32 = arith.constant 0 : i32
    %c0_i32_0 = arith.constant 0 : i32
    return %arg0, %c0_i32 : i32, i32
  }
}

</mosaic_0001>

<llo_original>
// kernel: tpu_custom_call.1
$region0: #{tpu_custom_call.1}
  #allocation0 [shape = 'u32[]', space=smem, size = 0x4, offset = 0x4, fixed_abs, tag = 'smem constant byte address 0x4 - core index']
  #allocation1 [shape = 'u32[144,128]{1,0:T(1,128)}', space=vmem, size = 0x12000, scoped, tag = 'internal scratch']
  %s0 = inlined_call_operand.hbm [shape: f32[8,256], index: 0, kind: input, shape index: {}]
  %s1 = inlined_call_operand.hbm [shape: bf16[256,128], index: 1, kind: input, shape index: {}]
  %s2 = inlined_call_operand.vmem [shape: f32[1,128], index: 2, kind: input, shape index: {}]
  %s3 = inlined_call_operand.hbm [shape: f32[8,128], index: 3, kind: output, shape index: {}]
  %s4 = sld [smem:[#allocation0]]
  $region30: #{tpu_custom_call.1} parent=0
    _
  %s6 = ssub.s32 1, %s4
  %s7 = scalar_select 0, %s6, %s4
  $region1: #{tpu_custom_call.1} parent=0
    #allocation2 [shape = 'u8[8192]{0}', space=vmem, size = 0x2000, scoped, tag = 'input window, operand 0, single buffered']
    #allocation3 [shape = 's32[1]{0}', space=sflag, size = 0x4, scoped, tag = 'scoped memory for tpu_custom_call.1']
    #allocation4 [shape = 's32[1]{0}', space=sflag, size = 0x4, scoped, tag = 'scoped memory for tpu_custom_call.1']
    #allocation5 [shape = 'u8[65536]{0}', space=vmem, size = 0x10000, scoped, tag = 'input window, operand 1, single buffered']
    #allocation6 [shape = 's32[1]{0}', space=sflag, size = 0x4, scoped, tag = 'scoped memory for tpu_custom_call.1']
    #allocation7 [shape = 'u8[4096]{0}', space=vmem, size = 0x1000, scoped, tag = 'output window, operand 0, single buffered']
    %8 = vsyncpa [#allocation3], 0
    %9 = vsyncpa [#allocation6], 0
    %10 = vsyncpa [#allocation4], 0
    // Predicated region
    $region2: #{tpu_custom_call.1} parent=1 // pred_check
      _
    $region3: #{tpu_custom_call.1} parent=1 // pred_check_branch
      %12 = sbr.rel (0) target = $region5
    $region4: #{tpu_custom_call.1} parent=1 // pred_region
      %s14 = ssub.s32 256, 256
      %15 = vsyncadd [#allocation3], %s14
      %s17 = sshll.u32 [#allocation2], 4
      %s18 = int_to_ptr.vmem [resolvable:$true] %s17
      %20 = dma.hbm_to_vmem [thread:$0]  %s0, 256, %s18, [#allocation3]
    $region5: #{tpu_custom_call.1} parent=1 // pred_fallthru
      _
    // Predicated region
    $region6: #{tpu_custom_call.1} parent=1 // pred_check
      _
    $region7: #{tpu_custom_call.1} parent=1 // pred_check_branch
      %22 = sbr.rel (0) target = $region9
    $region8: #{tpu_custom_call.1} parent=1 // pred_region
      %s24 = ssub.s32 2048, 2048
      %25 = vsyncadd [#allocation6], %s24
      %s26 = sshll.u32 [#allocation5], 4
      %s27 = int_to_ptr.vmem [resolvable:$true] %s26
      %32 = dma.hbm_to_vmem [thread:$0]  %s1, 2048, %s27, [#allocation6], 64, 64, 4
    $region9: #{tpu_custom_call.1} parent=1 // pred_fallthru
      _
    // Predicated region
    $region10: #{tpu_custom_call.1} parent=1 // pred_check
      _
    $region11: #{tpu_custom_call.1} parent=1 // pred_check_branch
      %34 = sbr.rel (0) target = $region13
    $region12: #{tpu_custom_call.1} parent=1 // pred_region
      _
    $region13: #{tpu_custom_call.1} parent=1 // pred_fallthru
      _
    // Predicated region
    $region14: #{tpu_custom_call.1} parent=1 // pred_check
      _
    $region15: #{tpu_custom_call.1} parent=1 // pred_check_branch
      %36 = sbr.rel (0) target = $region17
    $region16: #{tpu_custom_call.1} parent=1 // pred_region
      %37 = dma.done [#allocation3], 256
    $region17: #{tpu_custom_call.1} parent=1 // pred_fallthru
      _
    // Predicated region
    $region18: #{tpu_custom_call.1} parent=1 // pred_check
      _
    $region19: #{tpu_custom_call.1} parent=1 // pred_check_branch
      %39 = sbr.rel (0) target = $region21
    $region20: #{tpu_custom_call.1} parent=1 // pred_region
      %40 = dma.done [#allocation6], 2048
    $region21: #{tpu_custom_call.1} parent=1 // pred_fallthru
      _
    %v42 = vld [vmem:[#allocation2] sm:$0xff]
    %v43 = vld [vmem:[#allocation2 + $0x8] sm:$0xff]
    %v44 = vpack.c.bf16 %v42, %v42
    %v45 = vpack.c.bf16 %v43, %v43
    %v46 = vld [vmem:[#allocation5] sm:$0xf]
    %v47 = vld [vmem:[#allocation5 + $0x4] sm:$0xf]
    %v48 = vld [vmem:[#allocation5 + $0x8] sm:$0xf]
    %v49 = vld [vmem:[#allocation5 + $0xc] sm:$0xf]
    %v50 = vld [vmem:[#allocation5 + $0x10] sm:$0xf]
    %v51 = vld [vmem:[#allocation5 + $0x14] sm:$0xf]
    %v52 = vld [vmem:[#allocation5 + $0x18] sm:$0xf]
    %v53 = vld [vmem:[#allocation5 + $0x1c] sm:$0xf]
    %v54 = vld [vmem:[#allocation5 + $0x20] sm:$0xf]
    %v55 = vld [vmem:[#allocation5 + $0x24] sm:$0xf]
    %v56 = vld [vmem:[#allocation5 + $0x28] sm:$0xf]
    %v57 = vld [vmem:[#allocation5 + $0x2c] sm:$0xf]
    %v58 = vld [vmem:[#allocation5 + $0x30] sm:$0xf]
    %v59 = vld [vmem:[#allocation5 + $0x34] sm:$0xf]
    %v60 = vld [vmem:[#allocation5 + $0x38] sm:$0xf]
    %v61 = vld [vmem:[#allocation5 + $0x3c] sm:$0xf]
    %v62 = vld [vmem:[#allocation5 + $0x40] sm:$0xf]
    %v63 = vld [vmem:[#allocation5 + $0x44] sm:$0xf]
    %v64 = vld [vmem:[#allocation5 + $0x48] sm:$0xf]
    %v65 = vld [vmem:[#allocation5 + $0x4c] sm:$0xf]
    %v66 = vld [vmem:[#allocation5 + $0x50] sm:$0xf]
    %v67 = vld [vmem:[#allocation5 + $0x54] sm:$0xf]
    %v68 = vld [vmem:[#allocation5 + $0x58] sm:$0xf]
    %v69 = vld [vmem:[#allocation5 + $0x5c] sm:$0xf]
    %v70 = vld [vmem:[#allocation5 + $0x60] sm:$0xf]
    %v71 = vld [vmem:[#allocation5 + $0x64] sm:$0xf]
    %v72 = vld [vmem:[#allocation5 + $0x68] sm:$0xf]
    %v73 = vld [vmem:[#allocation5 + $0x6c] sm:$0xf]
    %v74 = vld [vmem:[#allocation5 + $0x70] sm:$0xf]
    %v75 = vld [vmem:[#allocation5 + $0x74] sm:$0xf]
    %v76 = vld [vmem:[#allocation5 + $0x78] sm:$0xf]
    %v77 = vld [vmem:[#allocation5 + $0x7c] sm:$0xf]
    %v78 = vld [vmem:[%s2] sm:$0x1]
    %v80 = vlaneseq
    %v81 = vshrl.u32 %v80, 7
    %v82 = vsub.s32 0, %v81
    %v83 = vrot.slane %v78, %v82
    %v117 = vunpack.c.l.b16 %v46
    %v118 = vunpack.c.l.b16 %v47
    %v119 = vunpack.c.l.b16 %v48
    %v120 = vunpack.c.l.b16 %v49
    %v121 = vunpack.c.l.b16 %v50
    %v122 = vunpack.c.l.b16 %v51
    %v123 = vunpack.c.l.b16 %v52
    %v124 = vunpack.c.l.b16 %v53
    %v125 = vunpack.c.l.b16 %v54
    %v126 = vunpack.c.l.b16 %v55
    %v127 = vunpack.c.l.b16 %v56
    %v128 = vunpack.c.l.b16 %v57
    %v129 = vunpack.c.l.b16 %v58
    %v130 = vunpack.c.l.b16 %v59
    %v131 = vunpack.c.l.b16 %v60
    %v132 = vunpack.c.l.b16 %v61
    %v133 = vunpack.c.l.b16 %v62
    %v134 = vunpack.c.l.b16 %v63
    %v135 = vunpack.c.l.b16 %v64
    %v136 = vunpack.c.l.b16 %v65
    %v137 = vunpack.c.l.b16 %v66
    %v138 = vunpack.c.l.b16 %v67
    %v139 = vunpack.c.l.b16 %v68
    %v140 = vunpack.c.l.b16 %v69
    %v141 = vunpack.c.l.b16 %v70
    %v142 = vunpack.c.l.b16 %v71
    %v143 = vunpack.c.l.b16 %v72
    %v144 = vunpack.c.l.b16 %v73
    %v145 = vunpack.c.l.b16 %v74
    %v146 = vunpack.c.l.b16 %v75
    %v147 = vunpack.c.l.b16 %v76
    %v148 = vunpack.c.l.b16 %v77
    %v149 = vpack.c.b16 %v118, %v117
    %v150 = vpack.c.b16 %v120, %v119
    %v151 = vpack.c.b16 %v122, %v121
    %v152 = vpack.c.b16 %v124, %v123
    %v153 = vpack.c.b16 %v126, %v125
    %v154 = vpack.c.b16 %v128, %v127
    %v155 = vpack.c.b16 %v130, %v129
    %v156 = vpack.c.b16 %v132, %v131
    %v157 = vpack.c.b16 %v134, %v133
    %v158 = vpack.c.b16 %v136, %v135
    %v159 = vpack.c.b16 %v138, %v137
    %v160 = vpack.c.b16 %v140, %v139
    %v161 = vpack.c.b16 %v142, %v141
    %v162 = vpack.c.b16 %v144, %v143
    %v163 = vpack.c.b16 %v146, %v145
    %v164 = vpack.c.b16 %v148, %v147
    %181 = vmatprep.subr.bf16.mxu0 0
    %182 = vmatpush1.bf16.msra.mxu0 %v149
    %183 = vmatprep.subr.bf16.mxu0 0
    %184 = vmatpush1.bf16.msra.mxu0 %v150
    %185 = vmatprep.subr.bf16.mxu0 0
    %186 = vmatpush1.bf16.msra.mxu0 %v151
    %187 = vmatprep.subr.bf16.mxu0 0
    %188 = vmatpush1.bf16.msra.mxu0 %v152
    %189 = vmatprep.subr.bf16.mxu0 0
    %190 = vmatpush1.bf16.msra.mxu0 %v153
    %191 = vmatprep.subr.bf16.mxu0 0
    %192 = vmatpush1.bf16.msra.mxu0 %v154
    %193 = vmatprep.subr.bf16.mxu0 0
    %194 = vmatpush1.bf16.msra.mxu0 %v155
    %195 = vmatprep.subr.bf16.mxu0 0
    %196 = vmatpush1.bf16.msra.mxu0 %v156
    %197 = vmatprep.subr.bf16.mxu0 0
    %198 = vmatpush1.bf16.msra.mxu0 %v157
    %199 = vmatprep.subr.bf16.mxu0 0
    %200 = vmatpush1.bf16.msra.mxu0 %v158
    %201 = vmatprep.subr.bf16.mxu0 0
    %202 = vmatpush1.bf16.msra.mxu0 %v159
    %203 = vmatprep.subr.bf16.mxu0 0
    %204 = vmatpush1.bf16.msra.mxu0 %v160
    %205 = vmatprep.subr.bf16.mxu0 0
    %206 = vmatpush1.bf16.msra.mxu0 %v161
    %207 = vmatprep.subr.bf16.mxu0 0
    %208 = vmatpush1.bf16.msra.mxu0 %v162
    %209 = vmatprep.subr.bf16.mxu0 0
    %210 = vmatpush1.bf16.msra.mxu0 %v163
    %211 = vmatprep.subr.bf16.mxu0 0
    %212 = vmatpush1.bf16.msra.mxu0 %v164
    %213 = vmatprep.mubr.bf16.mxu0 %v45
    %214 = vmatmul.mubr.bf16.gmra.mrb[0].mxu0 %v44
    %v215 = vpop.f32.mrb[0].mxu0
    %v216 = vadd.f32 %v83, %v215
    %v217 = vpop.f32.mrb[0].mxu0
    %v218 = vpop.f32.mrb[0].mxu0
    %v219 = vpop.f32.mrb[0].mxu0
    %220 = vdwg.mxu0
    %221 = vmax.xlane.f32.xlu0 %v216
    %v222 = vpop.xlane.xlu0 %221
    %v223 = vsub.f32 %v216, %v222
    %v224 = vmul.f32 %v223, 1.442695
    %v225 = vpow.pop %v224
    %226 = vadd.xlane.f32.xlu0 %v225
    %v227 = vpop.xlane.xlu0 %226
    %v228 = vlog2.pop %v227
    %v229 = vmul.f32 %v228, 0.6931472
    %v230 = vsub.f32 %v223, %v229
    %231 = vst [vmem:[#allocation7] sm:$0xff] %v230
    // Predicated region
    $region22: #{tpu_custom_call.1} parent=1 // pred_check
      _
    $region23: #{tpu_custom_call.1} parent=1 // pred_check_branch
      %233 = sbr.rel (0) target = $region25
    $region24: #{tpu_custom_call.1} parent=1 // pred_region
      %s235 = ssub.s32 128, 128
      %236 = vsyncadd [#allocation4], %s235
      %s238 = sshll.u32 [#allocation7], 4
      %s239 = int_to_ptr.vmem [resolvable:$true] %s238
      %241 = dma.vmem_to_hbm [thread:$0]  %s239, 128, %s3, [#allocation4]
    $region25: #{tpu_custom_call.1} parent=1 // pred_fallthru
      _
    // Predicated region
    $region26: #{tpu_custom_call.1} parent=1 // pred_check
      _
    $region27: #{tpu_custom_call.1} parent=1 // pred_check_branch
      %243 = sbr.rel (0) target = $region29
    $region28: #{tpu_custom_call.1} parent=1 // pred_region
      %244 = dma.done [#allocation4], 128
    $region29: #{tpu_custom_call.1} parent=1 // pred_fallthru
      _
    %245 = vsyncpa [#allocation3], 1
    %246 = vsyncpa [#allocation6], 1
    %247 = vsyncpa [#allocation4], 1

</llo_original>
